<compile_context>
chip_gen: v6e
topology: v6e:2x2x1
jax: 0.10.0
libtpu: 0.0.40
codegen_flags: <defaults>
</compile_context>

<pallas_src>
import jax
import jax.numpy as jnp
from jax.experimental import pallas as pl
from jax.experimental.pallas import tpu as pltpu


def _fused_affine_cond_kernel(p_ref, x_ref, o_ref):
    """p_ref: SMEM (4,) f32 = [w0, w1, w2, b]  (fused affine map 3 -> 1)
       x_ref: VMEM (B, 3) f32
       o_ref: VMEM (B, 1) f32
    """
    w0 = p_ref[0]
    w1 = p_ref[1]
    w2 = p_ref[2]
    b = p_ref[3]

    x = x_ref[...]                                            # (B, 3)
    # Three VPU FMAs (scalar * vector) — no MXU involvement.
    y = x[:, 0:1] * w0 + x[:, 1:2] * w1 + x[:, 2:3] * w2 + b  # (B, 1)

    # ForwardWithControlFlowTest: `if y.sum(): return y*2; return -y`
    # Folded into a single scalar scale factor -> one vmul on the tile.
    s = jnp.sum(y)
    scale = jnp.where(s != 0.0, 2.0, -1.0)
    o_ref[...] = y * scale


def fuse_params(w1, b1, w2, b2):
    """Hoisted, one-time fusion of the two affine layers:
       (x @ w1 + b1) @ w2 + b2  ==  x @ (w1 @ w2) + (b1 @ w2 + b2).
    Call once at init; weights are static across inference calls."""
    w_eff = (w1 @ w2).reshape(3)                  # (3,)
    b_eff = (b1 @ w2 + b2).reshape(1)             # (1,)
    return jnp.concatenate([w_eff, b_eff]).astype(jnp.float32)   # (4,)


def model_with_control_flow(x, params):
    """x: (B, 3) f32.  params: (4,) f32 from fuse_params.
    Returns (B, 1) f32, matching the PyTorch module's output layout."""
    B = x.shape[0]
    x = x.astype(jnp.float32)

    return pl.pallas_call(
        _fused_affine_cond_kernel,
        out_shape=jax.ShapeDtypeStruct((B, 1), jnp.float32),
        grid=(),
        in_specs=[
            pl.BlockSpec(memory_space=pltpu.MemorySpace.SMEM),  # packed scalars
            pl.BlockSpec((B, 3), lambda: (0, 0)),               # x, full block
        ],
        out_specs=pl.BlockSpec((B, 1), lambda: (0, 0)),
    )(params, x)


def init_params(key):
    """Deterministic init matching PyTorch nn.Linear default:
    U(-1/sqrt(fan_in), 1/sqrt(fan_in)) for both weight and bias."""
    k1, k2, k3, k4 = jax.random.split(key, 4)
    bound1 = 1.0 / jnp.sqrt(3.0)   # fan_in = 3
    bound2 = 1.0 / jnp.sqrt(2.0)   # fan_in = 2
    # stored already transposed to (in, out)
    w1 = jax.random.uniform(k1, (3, 2), jnp.float32, -bound1, bound1)
    b1 = jax.random.uniform(k2, (1, 2), jnp.float32, -bound1, bound1)
    w2 = jax.random.uniform(k3, (2, 1), jnp.float32, -bound2, bound2)
    b2 = jax.random.uniform(k4, (1, 1), jnp.float32, -bound2, bound2)
    return w1, b1, w2, b2


def reference(x, w1, b1, w2, b2):
    """Pure-JAX reference of the (unfused) PyTorch forward."""
    h = x @ w1 + b1
    y = h @ w2 + b2
    return jnp.where(jnp.sum(y) != 0.0, y * 2.0, -y)


if __name__ == "__main__":
    key = jax.random.PRNGKey(0)
    kx, kx2, kp = jax.random.split(key, 3)
    w1, b1, w2, b2 = init_params(kp)

    # One-time parameter fusion (outside the per-call path).
    params = jax.block_until_ready(fuse_params(w1, b1, w2, b2))

    # Primary check: small batch like the module's (1, 3) usage.
    B = 4
    x = jax.random.normal(kx, (B, 3), jnp.float32)
    out = jax.block_until_ready(model_with_control_flow(x, params))
    ref = reference(x, w1, b1, w2, b2)
    assert out.shape == (B, 1)
    assert jnp.allclose(out, ref, atol=1e-5, rtol=1e-5), (out, ref)

    # Secondary check: non-power-of-two batch to verify the padded-lane /
    # padded-sublane masking in the jnp.sum branch decision.
    B2 = 5
    x2 = jax.random.normal(kx2, (B2, 3), jnp.float32)
    out2 = jax.block_until_ready(model_with_control_flow(x2, params))
    ref2 = reference(x2, w1, b1, w2, b2)
    assert out2.shape == (B2, 1)
    assert jnp.allclose(out2, ref2, atol=1e-5, rtol=1e-5), (out2, ref2)

    print("KERNEL_OK")
</pallas_src>

<mosaic_0001>
module attributes {stable_mosaic.version = 11 : i64} {
  func.func @_fused_affine_cond_kernel(%arg0: memref<4xf32, #tpu.memory_space<smem>>, %arg1: memref<4x3xf32, #tpu.memory_space<vmem>>, %arg2: memref<4x1xf32, #tpu.memory_space<vmem>>) attributes {dimension_semantics = [], scalar_prefetch = 0 : i64, scratch_operands = 0 : i64, tpu.core_type = #tpu.core_type<tc>} {
    %c0 = arith.constant 0 : index
    %0 = memref.load %arg0[%c0] : memref<4xf32, #tpu.memory_space<smem>>
    %c1 = arith.constant 1 : index
    %1 = memref.load %arg0[%c1] : memref<4xf32, #tpu.memory_space<smem>>
    %c2 = arith.constant 2 : index
    %2 = memref.load %arg0[%c2] : memref<4xf32, #tpu.memory_space<smem>>
    %c3 = arith.constant 3 : index
    %3 = memref.load %arg0[%c3] : memref<4xf32, #tpu.memory_space<smem>>
    %c0_0 = arith.constant 0 : index
    %c0_1 = arith.constant 0 : index
    %4 = vector.load %arg1[%c0_0, %c0_1] : memref<4x3xf32, #tpu.memory_space<vmem>>, vector<4x3xf32>
    %5 = vector.extract_strided_slice %4 {offsets = [0, 0], sizes = [4, 1], strides = [1, 1]} : vector<4x3xf32> to vector<4x1xf32>
    %6 = vector.broadcast %0 : f32 to vector<4x1xf32>
    %7 = arith.mulf %5, %6 : vector<4x1xf32>
    %8 = vector.extract_strided_slice %4 {offsets = [0, 1], sizes = [4, 1], strides = [1, 1]} : vector<4x3xf32> to vector<4x1xf32>
    %9 = vector.broadcast %1 : f32 to vector<4x1xf32>
    %10 = arith.mulf %8, %9 : vector<4x1xf32>
    %11 = arith.addf %7, %10 : vector<4x1xf32>
    %12 = vector.extract_strided_slice %4 {offsets = [0, 2], sizes = [4, 1], strides = [1, 1]} : vector<4x3xf32> to vector<4x1xf32>
    %13 = vector.broadcast %2 : f32 to vector<4x1xf32>
    %14 = arith.mulf %12, %13 : vector<4x1xf32>
    %15 = arith.addf %11, %14 : vector<4x1xf32>
    %16 = vector.broadcast %3 : f32 to vector<4x1xf32>
    %17 = arith.addf %15, %16 : vector<4x1xf32>
    %18 = vector.shape_cast %17 : vector<4x1xf32> to vector<1x4x1xf32>
    %cst = arith.constant dense<0.000000e+00> : vector<1xf32>
    %19 = vector.multi_reduction <add>, %18, %cst [1, 2] : vector<1x4x1xf32> to vector<1xf32>
    %20 = vector.shape_cast %19 : vector<1xf32> to vector<1x1x1xf32>
    %21 = vector.extract %20[0, 0, 0] : f32 from vector<1x1x1xf32>
    %cst_2 = arith.constant 0.000000e+00 : f32
    %22 = arith.cmpf one, %21, %cst_2 : f32
    %cst_3 = arith.constant 2.000000e+00 : f32
    %cst_4 = arith.constant -1.000000e+00 : f32
    %23 = arith.select %22, %cst_3, %cst_4 : f32
    %24 = vector.broadcast %23 : f32 to vector<4x1xf32>
    %25 = arith.mulf %17, %24 : vector<4x1xf32>
    %c0_5 = arith.constant 0 : index
    %c0_6 = arith.constant 0 : index
    %26 = vector.load %arg2[%c0_5, %c0_6] : memref<4x1xf32, #tpu.memory_space<vmem>>, vector<4x1xf32>
    tpu.vector_store %arg2[%c0_5, %c0_6], %25 {strides = array<i32>} : memref<4x1xf32, #tpu.memory_space<vmem>>, vector<4x1xf32>,
    return
  }
}

</mosaic_0001>

<llo_original>
// kernel: tpu_custom_call.1
$region0: #{tpu_custom_call.1}
  #allocation0 [shape = 'u32[]', space=smem, size = 0x4, offset = 0x4, fixed_abs, tag = 'smem constant byte address 0x4 - core index']
  #allocation1 [shape = 'u32[144,128]{1,0:T(1,128)}', space=vmem, size = 0x12000, scoped, tag = 'internal scratch']
  %s0 = inlined_call_operand.hbm [shape: f32[4], index: 0, kind: input, shape index: {}]
  %s1 = inlined_call_operand.hbm [shape: f32[4,3], index: 1, kind: input, shape index: {}]
  %s2 = inlined_call_operand.vmem [shape: f32[4,1], index: 2, kind: output, shape index: {}]
  %s3 = sld [smem:[#allocation0]]
  $region26: #{tpu_custom_call.1} parent=0
    _
  %s5 = ssub.s32 1, %s3
  %s6 = scalar_select 0, %s5, %s3
  $region1: #{tpu_custom_call.1} parent=0
    #allocation2 [shape = 'u8[512]{0}', space=smem, size = 0x200, scoped, tag = 'input window, operand 0, single buffered']
    #allocation3 [shape = 's32[1]{0}', space=sflag, size = 0x4, scoped, tag = 'scoped memory for tpu_custom_call.1']
    #allocation4 [shape = 's32[1]{0}', space=sflag, size = 0x4, scoped, tag = 'scoped memory for tpu_custom_call.1']
    #allocation5 [shape = 'u8[2048]{0}', space=vmem, size = 0x800, scoped, tag = 'input window, operand 1, single buffered']
    %7 = vsyncpa [#allocation4], 0
    %8 = vsyncpa [#allocation3], 0
    // Predicated region
    $region2: #{tpu_custom_call.1} parent=1 // pred_check
      _
    $region3: #{tpu_custom_call.1} parent=1 // pred_check_branch
      %10 = sbr.rel (0) target = $region5
    $region4: #{tpu_custom_call.1} parent=1 // pred_region
      %s12 = ssub.s32 16, 16
      %13 = vsyncadd [#allocation4], %s12
      %16 = dma.hbm_to_smem %s0, 16, [#allocation2], [#allocation4]
    $region5: #{tpu_custom_call.1} parent=1 // pred_fallthru
      _
    // Predicated region
    $region6: #{tpu_custom_call.1} parent=1 // pred_check
      _
    $region7: #{tpu_custom_call.1} parent=1 // pred_check_branch
      %18 = sbr.rel (0) target = $region9
    $region8: #{tpu_custom_call.1} parent=1 // pred_region
      %s20 = ssub.s32 64, 64
      %21 = vsyncadd [#allocation3], %s20
      %s23 = sshll.u32 [#allocation5], 4
      %s24 = int_to_ptr.vmem [resolvable:$true] %s23
      %26 = dma.hbm_to_vmem [thread:$0]  %s1, 64, %s24, [#allocation3]
    $region9: #{tpu_custom_call.1} parent=1 // pred_fallthru
      _
    // Predicated region
    $region10: #{tpu_custom_call.1} parent=1 // pred_check
      _
    $region11: #{tpu_custom_call.1} parent=1 // pred_check_branch
      %28 = sbr.rel (0) target = $region13
    $region12: #{tpu_custom_call.1} parent=1 // pred_region
      %29 = dma.done [#allocation4], 16
    $region13: #{tpu_custom_call.1} parent=1 // pred_fallthru
      _
    // Predicated region
    $region14: #{tpu_custom_call.1} parent=1 // pred_check
      _
    $region15: #{tpu_custom_call.1} parent=1 // pred_check_branch
      %31 = sbr.rel (0) target = $region17
    $region16: #{tpu_custom_call.1} parent=1 // pred_region
      %32 = dma.done [#allocation3], 64
    $region17: #{tpu_custom_call.1} parent=1 // pred_fallthru
      _
    %33 = sfence
    %s34 = sld [smem:[#allocation2]]
    %s35 = sld [smem:[#allocation2 + $0x1]]
    %s36 = sld [smem:[#allocation2 + $0x2]]
    %s37 = sld [smem:[#allocation2 + $0x3]]
    %v38 = vld [vmem:[#allocation5] sm:$0xf]
    %v39 = vstv %s34
    %v40 = vmul.f32 %v38, %v39
    %v41 = vstv %s35
    %v42 = vmul.f32 %v38, %v41
    %44 = vrot.lane.b32.xlu0 %v42, 127
    %v45 = vpop.permute.xlu0 %44
    %v47 = vadd.f32 %v40, %v45
    %v48 = vstv %s36
    %v49 = vmul.f32 %v38, %v48
    %51 = vrot.lane.b32.xlu0 %v49, 126
    %v52 = vpop.permute.xlu0 %51
    %v54 = vadd.f32 %v47, %v52
    %v55 = vstv %s37
    %v56 = vadd.f32 %v54, %v55
    %vm57 = vcmask 3072
    %v58 = vsel %vm57, %v56, 0.0
    %59 = vadd.xlane.f32.xlu0 %v58
    %v60 = vpop.xlane.xlu0 %59
    %v61 = vrot.slane %v60, 4
    %v62 = vadd.f32 %v60, %v61
    %v63 = vrot.slane %v62, 2
    %v64 = vadd.f32 %v62, %v63
    %v65 = vrot.slane %v64, 1
    %v66 = vadd.f32 %v64, %v65
    %s67 = vtos %v66
    %p68 = scmp.ne.f32.partialorder %s67, 0.0
    %s69 = scalar_select %p68, 2.0, -1.0
    %v70 = vstv %s69
    %v71 = vmul.f32 %v56, %v70
    %72 = vst.msk [vmem:[%s2] sm:$0xf] %vm57, %v71
    // Predicated region
    $region18: #{tpu_custom_call.1} parent=1 // pred_check
      _
    $region19: #{tpu_custom_call.1} parent=1 // pred_check_branch
      %74 = sbr.rel (0) target = $region21
    $region20: #{tpu_custom_call.1} parent=1 // pred_region
      _
    $region21: #{tpu_custom_call.1} parent=1 // pred_fallthru
      _
    // Predicated region
    $region22: #{tpu_custom_call.1} parent=1 // pred_check
      _
    $region23: #{tpu_custom_call.1} parent=1 // pred_check_branch
      %76 = sbr.rel (0) target = $region25
    $region24: #{tpu_custom_call.1} parent=1 // pred_region
      _
    $region25: #{tpu_custom_call.1} parent=1 // pred_fallthru
      _
    %77 = vsyncpa [#allocation3], 1
    %78 = vsyncpa [#allocation4], 1

</llo_original>
